<compile_context>
chip_gen: v5e
topology: v5e:2x2
jax: 0.10.0
libtpu: 0.0.40
codegen_flags: <defaults>
</compile_context>

<pallas_src>
import functools

import jax
import jax.numpy as jnp
from jax import lax
from jax.experimental import pallas as pl
from jax.experimental.pallas import tpu as pltpu


# --------------------------------------------------------------------------------
# Shared per-tile LSTM cell compute
# --------------------------------------------------------------------------------
def _lstm_cell(x, h0_ref, c0_ref, wih_ref, whh_ref, b_ref, out_ref):
    """One LSTM step on a (TN, Hp) batch tile. x is f32, weights are bf16."""
    TN, Hp = h0_ref.shape
    h = h0_ref[...]                                  # (TN, Hp) f32
    c = c0_ref[...]                                  # (TN, Hp) f32

    # Two MXU pushes in bf16 with f32 accumulation (replaces the old
    # concat([x, h]) + fused matmul -> no (TN, 2Hp) VMEM temp / relayout).
    gates = jnp.dot(x.astype(jnp.bfloat16), wih_ref[...],
                    preferred_element_type=jnp.float32)
    gates = gates + jnp.dot(h.astype(jnp.bfloat16), whh_ref[...],
                            preferred_element_type=jnp.float32)
    gates = gates + b_ref[...]                       # (TN, 4Hp) f32

    # Gate slices are lane-aligned because Hp % 128 == 0 (free views).
    i_g = jax.nn.sigmoid(gates[:, 0 * Hp:1 * Hp])
    f_g = jax.nn.sigmoid(gates[:, 1 * Hp:2 * Hp])
    g_g = jnp.tanh(gates[:, 2 * Hp:3 * Hp])
    o_g = jax.nn.sigmoid(gates[:, 3 * Hp:4 * Hp])

    c_new = f_g * c + i_g * g_g                      # f32 elementwise (v5e-friendly)
    h_new = o_g * jnp.tanh(c_new)

    # Two direct lane-dense stores into the packed [h | c] slab (no output concat).
    out_ref[:, :Hp] = h_new
    out_ref[:, Hp:] = c_new


# --------------------------------------------------------------------------------
# Path A: small vocab -> embedding table resident in VMEM, gather = vector loads
# --------------------------------------------------------------------------------
def _lstm_encoder_vmem_kernel(ids_ref,            # (N_pad,)   int32 SMEM (prefetch)
                              emb_ref,            # (V, Hp)    f32   VMEM (whole table)
                              h0_ref, c0_ref,     # (TN, Hp)   f32   VMEM tiles
                              wih_ref, whh_ref,   # (Hp, 4Hp)  bf16  VMEM, grid-invariant
                              b_ref,              # (1, 4Hp)   f32   VMEM, grid-invariant
                              out_ref,            # (TN, 2Hp)  f32   VMEM [h_new | c_new]
                              x_buf):             # (TN, Hp)   f32   VMEM scratch
    TN, Hp = h0_ref.shape
    i = pl.program_id(0)

    def gather_row(r, carry):
        tok = ids_ref[i * TN + r]
        x_buf[pl.ds(r, 1), :] = emb_ref[pl.ds(tok, 1), :]
        return carry

    lax.fori_loop(0, TN, gather_row, 0)
    _lstm_cell(x_buf[...], h0_ref, c0_ref, wih_ref, whh_ref, b_ref, out_ref)


# --------------------------------------------------------------------------------
# Path B: large vocab -> table in HBM, double-buffered per-row DMA gather
# --------------------------------------------------------------------------------
def _lstm_encoder_hbm_kernel(ids_ref,             # (N_pad,)     int32 SMEM (prefetch)
                             emb_hbm,             # (V, Hp)      f32   HBM (pl.ANY)
                             h0_ref, c0_ref,      # (TN, Hp)     f32   VMEM tiles
                             wih_ref, whh_ref,    # (Hp, 4Hp)    bf16  VMEM, grid-invariant
                             b_ref,               # (1, 4Hp)     f32   VMEM, grid-invariant
                             out_ref,             # (TN, 2Hp)    f32   VMEM [h_new | c_new]
                             x_buf,               # (2, TN, Hp)  f32   VMEM double buffer
                             sem):                # (2,) DMA semaphores (one per slot)
    TN, Hp = h0_ref.shape
    i = pl.program_id(0)
    n = pl.num_programs(0)

    def issue_gather(tile, slot):
        def body(r, carry):
            tok = ids_ref[tile * TN + r]
            pltpu.make_async_copy(emb_hbm.at[pl.ds(tok, 1), :],
                                  x_buf.at[slot, pl.ds(r, 1), :],
                                  sem.at[slot]).start()
            return carry
        lax.fori_loop(0, TN, body, 0)

    # Prime the pipeline on the first grid step. This requires sequential grid
    # traversal, hence dimension_semantics=("arbitrary",) for this path.
    @pl.when(i == 0)
    def _():
        issue_gather(0, 0)

    slot = i % 2

    # Prefetch next tile's embedding rows while this tile computes.
    @pl.when(i + 1 < n)
    def _():
        issue_gather(i + 1, 1 - slot)

    # Wait for this tile's rows: the TN copies share sem[slot], so TN matching waits
    # fully drain it (cheap by now — they were issued a whole grid step ago).
    def wait_row(r, carry):
        pltpu.make_async_copy(emb_hbm.at[pl.ds(0, 1), :],
                              x_buf.at[slot, pl.ds(r, 1), :],
                              sem.at[slot]).wait()
        return carry
    lax.fori_loop(0, TN, wait_row, 0)

    _lstm_cell(x_buf[slot], h0_ref, c0_ref, wih_ref, whh_ref, b_ref, out_ref)


# --------------------------------------------------------------------------------
# One-time parameter preparation (hoisted out of the forward call)
# --------------------------------------------------------------------------------
def prepare_params(params, compute_dtype=jnp.bfloat16):
    """Transpose/pad/fuse weights once.

    * Weights go to the (x @ W^T) orientation, biases are fused.
    * Hidden/gate axes are padded to Hp = next multiple of 128 lanes so all in-kernel
      gate slices and output stores are lane-aligned.
    * W_ih^T / W_hh^T are cast to bf16 (native MXU dtype on v5e/v6e/v7x); embedding
      rows and bias stay f32 (all elementwise math stays f32).
    """
    emb = params["emb"]
    W_ih, W_hh = params["W_ih"], params["W_hh"]
    b = params["b_ih"] + params["b_hh"]
    V, H = emb.shape
    Hp = ((H + 127) // 128) * 128

    emb_p = jnp.zeros((V, Hp), jnp.float32).at[:, :H].set(emb.astype(jnp.float32))

    def pad_w(W):  # (4H, H) -> (Hp, 4Hp), gate blocks [i|f|g|o] each padded to Hp
        Wp = jnp.zeros((Hp, 4 * Hp), jnp.float32)
        for g in range(4):
            blk = W[g * H:(g + 1) * H, :].T.astype(jnp.float32)    # (H, H)
            Wp = Wp.at[:H, g * Hp:g * Hp + H].set(blk)
        return Wp.astype(compute_dtype)

    b_p = jnp.zeros((1, 4 * Hp), jnp.float32)
    for g in range(4):
        b_p = b_p.at[0, g * Hp:g * Hp + H].set(b[g * H:(g + 1) * H].astype(jnp.float32))

    return {"emb": emb_p, "W_ihT": pad_w(W_ih), "W_hhT": pad_w(W_hh), "b": b_p}


# --------------------------------------------------------------------------------
# Forward wrapper
# --------------------------------------------------------------------------------
@functools.partial(jax.jit, static_argnames=("force_hbm_gather",))
def lstm_encoder_forward(X, hidden, prepared, force_hbm_gather=False):
    """Mirrors LSTMEncoder.forward (num_layers=1; seq_len=1 after X.view(1, -1)).

    X: int array (any shape); hidden = (h0, c0), each (1, N, H).
    Returns (output (1, N, H), (h_n (1, N, H), c_n (1, N, H))).
    """
    emb, wih, whh, b = (prepared["emb"], prepared["W_ihT"],
                        prepared["W_hhT"], prepared["b"])
    V, Hp = emb.shape
    h0, c0 = hidden
    H = h0.shape[-1]

    ids = X.reshape(-1).astype(jnp.int32)          # X.view(1, -1): batch of N tokens
    N = ids.shape[0]
    h0 = h0.reshape(N, H)
    c0 = c0.reshape(N, H)

    # Pad the hidden feature axis to the lane-aligned width used in-kernel.
    if Hp != H:
        h0 = jnp.pad(h0, ((0, 0), (0, Hp - H)))
        c0 = jnp.pad(c0, ((0, 0), (0, Hp - H)))

    # Batch tile: multiple of 8 sublanes, capped at 256 (v6e/v7x MXU M-width), and
    # chosen so the grid has >= 2 tiles whenever N allows (two TensorCores on v7x).
    TN = max(8, min(256, ((-(-N // 2) + 7) // 8) * 8))
    n_tiles = -(-N // TN)
    N_pad = n_tiles * TN
    if N_pad != N:
        ids = jnp.pad(ids, (0, N_pad - N))                     # padded rows use token 0
        h0 = jnp.pad(h0, ((0, N_pad - N), (0, 0)))
        c0 = jnp.pad(c0, ((0, N_pad - N), (0, 0)))

    hc_spec = pl.BlockSpec((TN, Hp), lambda i, _ids: (i, 0))
    w_spec = pl.BlockSpec((Hp, 4 * Hp), lambda i, _ids: (0, 0))     # grid-invariant
    b_spec = pl.BlockSpec((1, 4 * Hp), lambda i, _ids: (0, 0))      # grid-invariant
    out_spec = pl.BlockSpec((TN, 2 * Hp), lambda i, _ids: (i, 0))

    table_bytes = V * Hp * emb.dtype.itemsize
    use_vmem_table = (table_bytes <= 4 * 1024 * 1024) and not force_hbm_gather

    if use_vmem_table:
        # Small vocab: table VMEM-resident; gather is plain vector loads (no DMAs).
        kernel = _lstm_encoder_vmem_kernel
        emb_spec = pl.BlockSpec((V, Hp), lambda i, _ids: (0, 0))
        scratch = [pltpu.VMEM((TN, Hp), jnp.float32)]
        dim_sem = ("parallel",)        # independent tiles -> v7x TC sharding
    else:
        # Large vocab: table stays in HBM; rows fetched with double-buffered DMAs.
        kernel = _lstm_encoder_hbm_kernel
        emb_spec = pl.BlockSpec(memory_space=pl.ANY)
        scratch = [pltpu.VMEM((2, TN, Hp), jnp.float32),
                   pltpu.SemaphoreType.DMA((2,))]
        dim_sem = ("arbitrary",)       # cross-step prefetch needs sequential grid

    grid_spec = pltpu.PrefetchScalarGridSpec(
        num_scalar_prefetch=1,                                   # ids -> SMEM
        grid=(n_tiles,),
        in_specs=[emb_spec, hc_spec, hc_spec, w_spec, w_spec, b_spec],
        out_specs=out_spec,
        scratch_shapes=scratch,
    )

    slab = pl.pallas_call(
        kernel,
        out_shape=jax.ShapeDtypeStruct((N_pad, 2 * Hp), jnp.float32),
        grid_spec=grid_spec,
        compiler_params=pltpu.CompilerParams(
            dimension_semantics=dim_sem,
            vmem_limit_bytes=64 * 1024 * 1024),
    )(ids, emb, h0, c0, wih, whh, b)

    h_n = slab[:N, :H]
    c_n = slab[:N, Hp:Hp + H]
    output = h_n                                                 # seq_len == 1
    return output.reshape(1, N, H), (h_n.reshape(1, N, H), c_n.reshape(1, N, H))


# --------------------------------------------------------------------------------
# Pure-JAX reference (PyTorch LSTM semantics, seq_len=1) and init
# --------------------------------------------------------------------------------
def _reference_forward(X, hidden, params):
    emb, W_ih, W_hh, b_ih, b_hh = (params["emb"], params["W_ih"], params["W_hh"],
                                   params["b_ih"], params["b_hh"])
    h0, c0 = hidden
    H = emb.shape[1]
    ids = X.reshape(1, -1)
    x = emb[ids[0]]                                              # (N, H)
    h, c = h0[0], c0[0]                                          # (N, H)
    gates = x @ W_ih.T + b_ih + h @ W_hh.T + b_hh
    i_g = jax.nn.sigmoid(gates[:, 0 * H:1 * H])
    f_g = jax.nn.sigmoid(gates[:, 1 * H:2 * H])
    g_g = jnp.tanh(gates[:, 2 * H:3 * H])
    o_g = jax.nn.sigmoid(gates[:, 3 * H:4 * H])
    c_new = f_g * c + i_g * g_g
    h_new = o_g * jnp.tanh(c_new)
    return h_new[None], (h_new[None], c_new[None])


def init_params(key, vocab_size, hidden_size):
    k1, k2, k3, k4, k5 = jax.random.split(key, 5)
    s = 1.0 / jnp.sqrt(hidden_size)
    return {
        "emb":  jax.random.normal(k1, (vocab_size, hidden_size), jnp.float32),
        "W_ih": jax.random.uniform(k2, (4 * hidden_size, hidden_size), jnp.float32, -s, s),
        "W_hh": jax.random.uniform(k3, (4 * hidden_size, hidden_size), jnp.float32, -s, s),
        "b_ih": jax.random.uniform(k4, (4 * hidden_size,), jnp.float32, -s, s),
        "b_hh": jax.random.uniform(k5, (4 * hidden_size,), jnp.float32, -s, s),
    }


if __name__ == "__main__":
    vocab_size = 32
    hidden_size = 32

    key = jax.random.PRNGKey(0)
    kp, kx, kh, kc = jax.random.split(key, 4)
    params = init_params(kp, vocab_size, hidden_size)
    prepared = prepare_params(params)        # one-time weight prep (bf16 + lane pad)

    def run_case(X, key_h, key_c, tag):
        N = X.size
        hidden = (0.1 * jax.random.normal(key_h, (1, N, hidden_size), jnp.float32),
                  0.1 * jax.random.normal(key_c, (1, N, hidden_size), jnp.float32))
        ref_out, (ref_h, ref_c) = _reference_forward(X, hidden, params)
        for force_hbm in (False, True):      # exercise both gather paths
            out, (h_n, c_n) = lstm_encoder_forward(X, hidden, prepared,
                                                   force_hbm_gather=force_hbm)
            jax.block_until_ready((out, h_n, c_n))
            assert out.shape == (1, N, hidden_size), (tag, force_hbm, out.shape)
            assert jnp.allclose(out, ref_out, atol=2e-2, rtol=2e-2), (tag, force_hbm)
            assert jnp.allclose(h_n, ref_h, atol=2e-2, rtol=2e-2), (tag, force_hbm)
            assert jnp.allclose(c_n, ref_c, atol=2e-2, rtol=2e-2), (tag, force_hbm)

    # X of shape (2, 4) -> view(1, -1) -> batch of N = 8 tokens (single grid tile).
    X1 = jax.random.randint(kx, (2, 4), 0, vocab_size, dtype=jnp.int32)
    run_case(X1, kh, kc, "n8")

    # X of shape (4, 5) -> N = 20: exercises multi-tile grid + batch padding on both
    # the VMEM-table path and the double-buffered HBM-gather path.
    kx2, kh2, kc2 = jax.random.split(kc, 3)
    X2 = jax.random.randint(kx2, (4, 5), 0, vocab_size, dtype=jnp.int32)
    run_case(X2, kh2, kc2, "n20")

    print("KERNEL_OK")
</pallas_src>

<mosaic_0001>
module attributes {stable_mosaic.version = 11 : i64} {
  func.func @_lstm_encoder_vmem_kernel(%arg0: i32, %arg1: memref<8xi32, #tpu.memory_space<smem>>, %arg2: memref<32x128xf32, #tpu.memory_space<vmem>>, %arg3: memref<8x128xf32, #tpu.memory_space<vmem>>, %arg4: memref<8x128xf32, #tpu.memory_space<vmem>>, %arg5: memref<128x512xbf16, #tpu.memory_space<vmem>>, %arg6: memref<128x512xbf16, #tpu.memory_space<vmem>>, %arg7: memref<1x512xf32, #tpu.memory_space<vmem>>, %arg8: memref<8x256xf32, #tpu.memory_space<vmem>>, %arg9: memref<8x128xf32, #tpu.memory_space<vmem>>) attributes {dimension_semantics = [#tpu.dimension_semantics<parallel>], iteration_bounds = array<i64: 1>, scalar_prefetch = 1 : i64, scratch_operands = 1 : i64, tpu.core_type = #tpu.core_type<tc>, window_params = [{pipeline_mode = #tpu.pipeline_mode<synchronous>, transform_indices = @transform_0, window_bounds = array<i64: 32, 128>}, {transform_indices = @transform_1, window_bounds = array<i64: 8, 128>}, {transform_indices = @transform_2, window_bounds = array<i64: 8, 128>}, {pipeline_mode = #tpu.pipeline_mode<synchronous>, transform_indices = @transform_3, window_bounds = array<i64: 128, 512>}, {pipeline_mode = #tpu.pipeline_mode<synchronous>, transform_indices = @transform_4, window_bounds = array<i64: 128, 512>}, {pipeline_mode = #tpu.pipeline_mode<synchronous>, transform_indices = @transform_5, window_bounds = array<i64: 1, 512>}, {transform_indices = @transform_6, window_bounds = array<i64: 8, 256>}]} {
    %c0_i32 = arith.constant 0 : i32
    %c8_i32 = arith.constant 8 : i32
    %0 = arith.addi %c0_i32, %c8_i32 : i32
    %c1_i32 = arith.constant 1 : i32
    scf.for %arg10 = %c0_i32 to %0 step %c1_i32  : i32 {
      %c8_i32_19 = arith.constant 8 : i32
      %41 = arith.muli %arg0, %c8_i32_19 : i32
      %42 = arith.addi %41, %arg10 : i32
      %43 = arith.index_cast %42 : i32 to index
      %44 = memref.load %arg1[%43] : memref<8xi32, #tpu.memory_space<smem>>
      %45 = arith.index_cast %44 : i32 to index
      %c0_20 = arith.constant 0 : index
      %46 = vector.load %arg2[%45, %c0_20] : memref<32x128xf32, #tpu.memory_space<vmem>>, vector<1x128xf32>
      %47 = arith.index_cast %arg10 : i32 to index
      %c0_21 = arith.constant 0 : index
      %48 = vector.load %arg9[%47, %c0_21] : memref<8x128xf32, #tpu.memory_space<vmem>>, vector<1x128xf32>
      tpu.vector_store %arg9[%47, %c0_21], %46 {strides = array<i32>} : memref<8x128xf32, #tpu.memory_space<vmem>>, vector<1x128xf32>,
    }
    %c8_i32_0 = arith.constant 8 : i32
    %c0 = arith.constant 0 : index
    %c0_1 = arith.constant 0 : index
    %1 = vector.load %arg9[%c0, %c0_1] : memref<8x128xf32, #tpu.memory_space<vmem>>, vector<8x128xf32>
    %c0_2 = arith.constant 0 : index
    %c0_3 = arith.constant 0 : index
    %2 = vector.load %arg3[%c0_2, %c0_3] : memref<8x128xf32, #tpu.memory_space<vmem>>, vector<8x128xf32>
    %c0_4 = arith.constant 0 : index
    %c0_5 = arith.constant 0 : index
    %3 = vector.load %arg4[%c0_4, %c0_5] : memref<8x128xf32, #tpu.memory_space<vmem>>, vector<8x128xf32>
    %4 = arith.truncf %1 : vector<8x128xf32> to vector<8x128xbf16>
    %c0_6 = arith.constant 0 : index
    %c0_7 = arith.constant 0 : index
    %5 = vector.load %arg5[%c0_6, %c0_7] : memref<128x512xbf16, #tpu.memory_space<vmem>>, vector<128x512xbf16>
    %cst = arith.constant dense<0.000000e+00> : vector<8x512xf32>
    %6 = tpu.matmul %4, %5, %cst {dimension_numbers = #tpu.dot_dimension_numbers<[1], [0], [0], [1], [0, 0, 1, 1], [], []>} : vector<8x128xbf16>, vector<128x512xbf16>, vector<8x512xf32> -> vector<8x512xf32>
    %7 = arith.truncf %2 : vector<8x128xf32> to vector<8x128xbf16>
    %c0_8 = arith.constant 0 : index
    %c0_9 = arith.constant 0 : index
    %8 = vector.load %arg6[%c0_8, %c0_9] : memref<128x512xbf16, #tpu.memory_space<vmem>>, vector<128x512xbf16>
    %cst_10 = arith.constant dense<0.000000e+00> : vector<8x512xf32>
    %9 = tpu.matmul %7, %8, %cst_10 {dimension_numbers = #tpu.dot_dimension_numbers<[1], [0], [0], [1], [0, 0, 1, 1], [], []>} : vector<8x128xbf16>, vector<128x512xbf16>, vector<8x512xf32> -> vector<8x512xf32>
    %10 = arith.addf %6, %9 : vector<8x512xf32>
    %c0_11 = arith.constant 0 : index
    %c0_12 = arith.constant 0 : index
    %11 = vector.load %arg7[%c0_11, %c0_12] : memref<1x512xf32, #tpu.memory_space<vmem>>, vector<1x512xf32>
    %12 = vector.broadcast %11 : vector<1x512xf32> to vector<8x512xf32>
    %13 = arith.addf %10, %12 : vector<8x512xf32>
    %14 = vector.extract_strided_slice %13 {offsets = [0, 0], sizes = [8, 128], strides = [1, 1]} : vector<8x512xf32> to vector<8x128xf32>
    %15 = arith.negf %14 : vector<8x128xf32>
    %16 = math.exp %15 : vector<8x128xf32>
    %cst_13 = arith.constant 1.000000e+00 : f32
    %17 = vector.broadcast %cst_13 : f32 to vector<8x128xf32>
    %18 = arith.addf %17, %16 : vector<8x128xf32>
    %19 = arith.divf %17, %18 : vector<8x128xf32>
    %20 = vector.extract_strided_slice %13 {offsets = [0, 128], sizes = [8, 128], strides = [1, 1]} : vector<8x512xf32> to vector<8x128xf32>
    %21 = arith.negf %20 : vector<8x128xf32>
    %22 = math.exp %21 : vector<8x128xf32>
    %cst_14 = arith.constant 1.000000e+00 : f32
    %23 = vector.broadcast %cst_14 : f32 to vector<8x128xf32>
    %24 = arith.addf %23, %22 : vector<8x128xf32>
    %25 = arith.divf %23, %24 : vector<8x128xf32>
    %26 = vector.extract_strided_slice %13 {offsets = [0, 256], sizes = [8, 128], strides = [1, 1]} : vector<8x512xf32> to vector<8x128xf32>
    %27 = math.tanh %26 : vector<8x128xf32>
    %28 = vector.extract_strided_slice %13 {offsets = [0, 384], sizes = [8, 128], strides = [1, 1]} : vector<8x512xf32> to vector<8x128xf32>
    %29 = arith.negf %28 : vector<8x128xf32>
    %30 = math.exp %29 : vector<8x128xf32>
    %cst_15 = arith.constant 1.000000e+00 : f32
    %31 = vector.broadcast %cst_15 : f32 to vector<8x128xf32>
    %32 = arith.addf %31, %30 : vector<8x128xf32>
    %33 = arith.divf %31, %32 : vector<8x128xf32>
    %34 = arith.mulf %25, %3 : vector<8x128xf32>
    %35 = arith.mulf %19, %27 : vector<8x128xf32>
    %36 = arith.addf %34, %35 : vector<8x128xf32>
    %37 = math.tanh %36 : vector<8x128xf32>
    %38 = arith.mulf %33, %37 : vector<8x128xf32>
    %c0_16 = arith.constant 0 : index
    %c0_17 = arith.constant 0 : index
    %39 = vector.load %arg8[%c0_16, %c0_17] : memref<8x256xf32, #tpu.memory_space<vmem>>, vector<8x128xf32>
    tpu.vector_store %arg8[%c0_16, %c0_17], %38 {strides = array<i32>} : memref<8x256xf32, #tpu.memory_space<vmem>>, vector<8x128xf32>,
    %c0_18 = arith.constant 0 : index
    %c128 = arith.constant 128 : index
    %40 = vector.load %arg8[%c0_18, %c128] : memref<8x256xf32, #tpu.memory_space<vmem>>, vector<8x128xf32>
    tpu.vector_store %arg8[%c0_18, %c128], %36 {strides = array<i32>} : memref<8x256xf32, #tpu.memory_space<vmem>>, vector<8x128xf32>,
    return
  }
  func.func @transform_0(%arg0: i32, %arg1: memref<8xi32, #tpu.memory_space<smem>>) -> (i32, i32) {
    %c0_i32 = arith.constant 0 : i32
    %c0_i32_0 = arith.constant 0 : i32
    %c0_i32_1 = arith.constant 0 : i32
    return %c0_i32, %c0_i32_0 : i32, i32
  }
  func.func @transform_1(%arg0: i32, %arg1: memref<8xi32, #tpu.memory_space<smem>>) -> (i32, i32) {
    %c0_i32 = arith.constant 0 : i32
    %c0_i32_0 = arith.constant 0 : i32
    return %arg0, %c0_i32 : i32, i32
  }
  func.func @transform_2(%arg0: i32, %arg1: memref<8xi32, #tpu.memory_space<smem>>) -> (i32, i32) {
    %c0_i32 = arith.constant 0 : i32
    %c0_i32_0 = arith.constant 0 : i32
    return %arg0, %c0_i32 : i32, i32
  }
  func.func @transform_3(%arg0: i32, %arg1: memref<8xi32, #tpu.memory_space<smem>>) -> (i32, i32) {
    %c0_i32 = arith.constant 0 : i32
    %c0_i32_0 = arith.constant 0 : i32
    %c0_i32_1 = arith.constant 0 : i32
    return %c0_i32, %c0_i32_0 : i32, i32
  }
  func.func @transform_4(%arg0: i32, %arg1: memref<8xi32, #tpu.memory_space<smem>>) -> (i32, i32) {
    %c0_i32 = arith.constant 0 : i32
    %c0_i32_0 = arith.constant 0 : i32
    %c0_i32_1 = arith.constant 0 : i32
    return %c0_i32, %c0_i32_0 : i32, i32
  }
  func.func @transform_5(%arg0: i32, %arg1: memref<8xi32, #tpu.memory_space<smem>>) -> (i32, i32) {
    %c0_i32 = arith.constant 0 : i32
    %c0_i32_0 = arith.constant 0 : i32
    %c0_i32_1 = arith.constant 0 : i32
    return %c0_i32, %c0_i32_0 : i32, i32
  }
  func.func @transform_6(%arg0: i32, %arg1: memref<8xi32, #tpu.memory_space<smem>>) -> (i32, i32) {
    %c0_i32 = arith.constant 0 : i32
    %c0_i32_0 = arith.constant 0 : i32
    return %arg0, %c0_i32 : i32, i32
  }
}

</mosaic_0001>

<llo_original>
// kernel: lstm_encoder_forward.1
$region0: #{lstm_encoder_forward.1}
  #allocation0 [shape = 'u32[]', space=smem, size = 0x4, offset = 0x4, fixed_abs, tag = 'smem constant byte address 0x4 - core index']
  #allocation1 [shape = 'u32[72,128]{1,0:T(1,128)}', space=vmem, size = 0x9000, scoped, tag = 'internal scratch']
  #allocation2 [shape = 'f32[8,128]{1,0:T(8,128)}', space=vmem, size = 0x1000, scoped, tag = 'scratch operand']
  #allocation3 [shape = 's32[1]{0}', space=sflag, size = 0x4, scoped, tag = 'scoped memory for lstm_encoder_forward.1']
  #allocation4 [shape = 'u8[512]{0}', space=smem, size = 0x200, scoped, tag = 'prefetched SMEM operand 0']
  %s0 = inlined_call_operand.vmem [shape: s32[8], index: 0, kind: input, shape index: {}]
  %s1 = inlined_call_operand.hbm [shape: f32[32,128], index: 1, kind: input, shape index: {}]
  %s2 = inlined_call_operand.vmem [shape: f32[8,128], index: 2, kind: input, shape index: {}]
  %s3 = inlined_call_operand.vmem [shape: f32[8,128], index: 3, kind: input, shape index: {}]
  %s4 = inlined_call_operand.hbm [shape: bf16[128,512], index: 4, kind: input, shape index: {}]
  %s5 = inlined_call_operand.hbm [shape: bf16[128,512], index: 5, kind: input, shape index: {}]
  %s6 = inlined_call_operand.vmem [shape: f32[1,512], index: 6, kind: input, shape index: {}]
  %s7 = inlined_call_operand.vmem [shape: f32[8,256], index: 7, kind: output, shape index: {}]
  %s8 = sld [smem:[#allocation0]]
  $region53: #{lstm_encoder_forward.1} parent=0
    _
  %s10 = ssub.s32 1, %s8
  %s11 = scalar_select 0, %s10, %s8
  %s13 = sshll.u32 %s0, 4
  %s14 = int_to_ptr.vmem [resolvable:$true] %s13
  %16 = dma.vmem_to_smem %s14, 16, [#allocation4], [#allocation3]
  %18 = dma.done [#allocation3], 16
  %19 = sfence
  $region1: #{lstm_encoder_forward.1} parent=0
    #allocation5 [shape = 'u8[16384]{0}', space=vmem, size = 0x4000, scoped, tag = 'input window, operand 1, single buffered']
    #allocation6 [shape = 's32[1]{0}', space=sflag, size = 0x4, scoped, tag = 'scoped memory for lstm_encoder_forward.1']
    #allocation7 [shape = 'u8[131072]{0}', space=vmem, size = 0x20000, scoped, tag = 'input window, operand 4, single buffered']
    #allocation8 [shape = 's32[1]{0}', space=sflag, size = 0x4, scoped, tag = 'scoped memory for lstm_encoder_forward.1']
    #allocation9 [shape = 'u8[131072]{0}', space=vmem, size = 0x20000, scoped, tag = 'input window, operand 5, single buffered']
    %20 = vsyncpa [#allocation6], 0
    %21 = vsyncpa [#allocation8], 0
    // Predicated region
    $region2: #{lstm_encoder_forward.1} parent=1 // pred_check
      _
    $region3: #{lstm_encoder_forward.1} parent=1 // pred_check_branch
      %23 = sbr.rel (0) target = $region5
    $region4: #{lstm_encoder_forward.1} parent=1 // pred_region
      %25 = vsyncadd [#allocation6], 0
      %s26 = sshll.u32 %s1, 4
      %s27 = int_to_ptr.hbm [resolvable:$true] %s26
      %s28 = sshll.u32 [#allocation5], 4
      %s29 = int_to_ptr.vmem [resolvable:$true] %s28
      %34 = dma.hbm_to_vmem [thread:$0]  %s27, 512, %s29, [#allocation6], 128, 128, 8
    $region5: #{lstm_encoder_forward.1} parent=1 // pred_fallthru
      _
    // Predicated region
    $region6: #{lstm_encoder_forward.1} parent=1 // pred_check
      _
    $region7: #{lstm_encoder_forward.1} parent=1 // pred_check_branch
      %36 = sbr.rel (0) target = $region9
    $region8: #{lstm_encoder_forward.1} parent=1 // pred_region
      _
    $region9: #{lstm_encoder_forward.1} parent=1 // pred_fallthru
      _
    // Predicated region
    $region10: #{lstm_encoder_forward.1} parent=1 // pred_check
      _
    $region11: #{lstm_encoder_forward.1} parent=1 // pred_check_branch
      %38 = sbr.rel (0) target = $region13
    $region12: #{lstm_encoder_forward.1} parent=1 // pred_region
      _
    $region13: #{lstm_encoder_forward.1} parent=1 // pred_fallthru
      _
    // Predicated region
    $region14: #{lstm_encoder_forward.1} parent=1 // pred_check
      _
    $region15: #{lstm_encoder_forward.1} parent=1 // pred_check_branch
      %40 = sbr.rel (0) target = $region17
    $region16: #{lstm_encoder_forward.1} parent=1 // pred_region
      %42 = vsyncadd [#allocation8], 0
      %s43 = sshll.u32 %s4, 4
      %s44 = int_to_ptr.hbm [resolvable:$true] %s43
      %s45 = sshll.u32 [#allocation7], 4
      %s46 = int_to_ptr.vmem [resolvable:$true] %s45
      %51 = dma.hbm_to_vmem [thread:$0]  %s44, 4096, %s46, [#allocation8], 256, 256, 16
    $region17: #{lstm_encoder_forward.1} parent=1 // pred_fallthru
      _
    // Predicated region
    $region18: #{lstm_encoder_forward.1} parent=1 // pred_check
      _
    $region19: #{lstm_encoder_forward.1} parent=1 // pred_check_branch
      %53 = sbr.rel (0) target = $region21
    $region20: #{lstm_encoder_forward.1} parent=1 // pred_region
      %55 = vsyncadd [#allocation8], 0
      %s56 = sshll.u32 %s5, 4
      %s57 = int_to_ptr.hbm [resolvable:$true] %s56
      %s58 = sshll.u32 [#allocation9], 4
      %s59 = int_to_ptr.vmem [resolvable:$true] %s58
      %64 = dma.hbm_to_vmem [thread:$0]  %s57, 4096, %s59, [#allocation8], 256, 256, 16
    $region21: #{lstm_encoder_forward.1} parent=1 // pred_fallthru
      _
    // Predicated region
    $region22: #{lstm_encoder_forward.1} parent=1 // pred_check
      _
    $region23: #{lstm_encoder_forward.1} parent=1 // pred_check_branch
      %66 = sbr.rel (0) target = $region25
    $region24: #{lstm_encoder_forward.1} parent=1 // pred_region
      _
    $region25: #{lstm_encoder_forward.1} parent=1 // pred_fallthru
      _
    // Predicated region
    $region26: #{lstm_encoder_forward.1} parent=1 // pred_check
      _
    $region27: #{lstm_encoder_forward.1} parent=1 // pred_check_branch
      %68 = sbr.rel (0) target = $region29
    $region28: #{lstm_encoder_forward.1} parent=1 // pred_region
      %70 = dma.done [#allocation6], 512
    $region29: #{lstm_encoder_forward.1} parent=1 // pred_fallthru
      _
    // Predicated region
    $region30: #{lstm_encoder_forward.1} parent=1 // pred_check
      _
    $region31: #{lstm_encoder_forward.1} parent=1 // pred_check_branch
      %72 = sbr.rel (0) target = $region33
    $region32: #{lstm_encoder_forward.1} parent=1 // pred_region
      %74 = dma.done [#allocation8], 4096
    $region33: #{lstm_encoder_forward.1} parent=1 // pred_fallthru
      _
    // Predicated region
    $region34: #{lstm_encoder_forward.1} parent=1 // pred_check
      _
    $region35: #{lstm_encoder_forward.1} parent=1 // pred_check_branch
      %76 = sbr.rel (0) target = $region37
    $region36: #{lstm_encoder_forward.1} parent=1 // pred_region
      %78 = dma.done [#allocation8], 4096
    $region37: #{lstm_encoder_forward.1} parent=1 // pred_fallthru
      _
    loop: start=0, step=1, limit=8
    $region38: #{lstm_encoder_forward.1} parent=1 // loop_pre_header
      _
    $region39: #{lstm_encoder_forward.1} parent=1 // loop_header
      %s80 = sphi 0, %s84
      %p81 = scmp.ge.s32.totalorder %s80, 8
    $region40: #{lstm_encoder_forward.1} parent=1 // loop_header_branch
      %83 = sbr.rel (%p81) target = $region44
    $region41: #{lstm_encoder_forward.1} parent=1 // loop_body
      %s85 = smul.u32 0, 8
      %s86 = sadd.s32 %s85, %s80
      %s87 = sld [smem:[#allocation4 + %s86]]
      %s88 = scalar_lea.vmem [#allocation5], %s87
      %v89 = vld [vmem:[%s88] sm:$0x1]
      %s90 = scalar_lea.vmem [#allocation2], %s80
      %91 = vst [vmem:[%s90] sm:$0x1] %v89
    $region42: #{lstm_encoder_forward.1} parent=1 // loop_footer
      %s84 = sadd.s32 1, %s80
    $region43: #{lstm_encoder_forward.1} parent=1 // loop_footer_branch
      %79 = sbr.rel target = $region39
    $region44: #{lstm_encoder_forward.1} parent=1 // loop_exit
      _
    %v92 = vld [vmem:[#allocation2] sm:$0xff]
    %v93 = vld [vmem:[%s2] sm:$0xff]
    %v94 = vld [vmem:[%s3] sm:$0xff]
    %v95 = vpack.c.bf16 %v92, %v92
    %v96 = vld [vmem:[#allocation7] sm:$0xff]
    %v97 = vld [vmem:[#allocation7 + $0x8] sm:$0xff]
    %v98 = vld [vmem:[#allocation7 + $0x10] sm:$0xff]
    %v99 = vld [vmem:[#allocation7 + $0x18] sm:$0xff]
    %v100 = vld [vmem:[#allocation7 + $0x20] sm:$0xff]
    %v101 = vld [vmem:[#allocation7 + $0x28] sm:$0xff]
    %v102 = vld [vmem:[#allocation7 + $0x30] sm:$0xff]
    %v103 = vld [vmem:[#allocation7 + $0x38] sm:$0xff]
    %v104 = vld [vmem:[#allocation7 + $0x40] sm:$0xff]
    %v105 = vld [vmem:[#allocation7 + $0x48] sm:$0xff]
    %v106 = vld [vmem:[#allocation7 + $0x50] sm:$0xff]
    %v107 = vld [vmem:[#allocation7 + $0x58] sm:$0xff]
    %v108 = vld [vmem:[#allocation7 + $0x60] sm:$0xff]
    %v109 = vld [vmem:[#allocation7 + $0x68] sm:$0xff]
    %v110 = vld [vmem:[#allocation7 + $0x70] sm:$0xff]
    %v111 = vld [vmem:[#allocation7 + $0x78] sm:$0xff]
    %v112 = vld [vmem:[#allocation7 + $0x80] sm:$0xff]
    %v113 = vld [vmem:[#allocation7 + $0x88] sm:$0xff]
    %v114 = vld [vmem:[#allocation7 + $0x90] sm:$0xff]
    %v115 = vld [vmem:[#allocation7 + $0x98] sm:$0xff]
    %v116 = vld [vmem:[#allocation7 + $0xa0] sm:$0xff]
    %v117 = vld [vmem:[#allocation7 + $0xa8] sm:$0xff]
    %v118 = vld [vmem:[#allocation7 + $0xb0] sm:$0xff]
    %v119 = vld [vmem:[#allocation7 + $0xb8] sm:$0xff]
    %v120 = vld [vmem:[#allocation7 + $0xc0] sm:$0xff]
    %v121 = vld [vmem:[#allocation7 + $0xc8] sm:$0xff]
    %v122 = vld [vmem:[#allocation7 + $0xd0] sm:$0xff]
    %v123 = vld [vmem:[#allocation7 + $0xd8] sm:$0xff]
    %v124 = vld [vmem:[#allocation7 + $0xe0] sm:$0xff]
    %v125 = vld [vmem:[#allocation7 + $0xe8] sm:$0xff]
    %v126 = vld [vmem:[#allocation7 + $0xf0] sm:$0xff]
    %v127 = vld [vmem:[#allocation7 + $0xf8] sm:$0xff]
    %v128 = vpack.c.bf16 %v93, %v93
    %v129 = vld [vmem:[#allocation9] sm:$0xff]
    %v130 = vld [vmem:[#allocation9 + $0x8] sm:$0xff]
    %v131 = vld [vmem:[#allocation9 + $0x10] sm:$0xff]
    %v132 = vld [vmem:[#allocation9 + $0x18] sm:$0xff]
    %v133 = vld [vmem:[#allocation9 + $0x20] sm:$0xff]
    %v134 = vld [vmem:[#allocation9 + $0x28] sm:$0xff]
    %v135 = vld [vmem:[#allocation9 + $0x30] sm:$0xff]
    %v136 = vld [vmem:[#allocation9 + $0x38] sm:$0xff]
    %v137 = vld [vmem:[#allocation9 + $0x40] sm:$0xff]
    %v138 = vld [vmem:[#allocation9 + $0x48] sm:$0xff]
    %v139 = vld [vmem:[#allocation9 + $0x50] sm:$0xff]
    %v140 = vld [vmem:[#allocation9 + $0x58] sm:$0xff]
    %v141 = vld [vmem:[#allocation9 + $0x60] sm:$0xff]
    %v142 = vld [vmem:[#allocation9 + $0x68] sm:$0xff]
    %v143 = vld [vmem:[#allocation9 + $0x70] sm:$0xff]
    %v144 = vld [vmem:[#allocation9 + $0x78] sm:$0xff]
    %v145 = vld [vmem:[#allocation9 + $0x80] sm:$0xff]
    %v146 = vld [vmem:[#allocation9 + $0x88] sm:$0xff]
    %v147 = vld [vmem:[#allocation9 + $0x90] sm:$0xff]
    %v148 = vld [vmem:[#allocation9 + $0x98] sm:$0xff]
    %v149 = vld [vmem:[#allocation9 + $0xa0] sm:$0xff]
    %v150 = vld [vmem:[#allocation9 + $0xa8] sm:$0xff]
    %v151 = vld [vmem:[#allocation9 + $0xb0] sm:$0xff]
    %v152 = vld [vmem:[#allocation9 + $0xb8] sm:$0xff]
    %v153 = vld [vmem:[#allocation9 + $0xc0] sm:$0xff]
    %v154 = vld [vmem:[#allocation9 + $0xc8] sm:$0xff]
    %v155 = vld [vmem:[#allocation9 + $0xd0] sm:$0xff]
    %v156 = vld [vmem:[#allocation9 + $0xd8] sm:$0xff]
    %v157 = vld [vmem:[#allocation9 + $0xe0] sm:$0xff]
    %v158 = vld [vmem:[#allocation9 + $0xe8] sm:$0xff]
    %v159 = vld [vmem:[#allocation9 + $0xf0] sm:$0xff]
    %v160 = vld [vmem:[#allocation9 + $0xf8] sm:$0xff]
    %v193 = vunpack.c.l.b16 %v129
    %v194 = vunpack.c.h.b16 %v129
    %v195 = vunpack.c.l.b16 %v130
    %v196 = vunpack.c.h.b16 %v130
    %v197 = vunpack.c.l.b16 %v131
    %v198 = vunpack.c.h.b16 %v131
    %v199 = vunpack.c.l.b16 %v132
    %v200 = vunpack.c.h.b16 %v132
    %v201 = vunpack.c.l.b16 %v133
    %v202 = vunpack.c.h.b16 %v133
    %v203 = vunpack.c.l.b16 %v134
    %v204 = vunpack.c.h.b16 %v134
    %v205 = vunpack.c.l.b16 %v135
    %v206 = vunpack.c.h.b16 %v135
    %v207 = vunpack.c.l.b16 %v136
    %v208 = vunpack.c.h.b16 %v136
    %v209 = vunpack.c.l.b16 %v137
    %v210 = vunpack.c.h.b16 %v137
    %v211 = vunpack.c.l.b16 %v138
    %v212 = vunpack.c.h.b16 %v138
    %v213 = vunpack.c.l.b16 %v139
    %v214 = vunpack.c.h.b16 %v139
    %v215 = vunpack.c.l.b16 %v140
    %v216 = vunpack.c.h.b16 %v140
    %v217 = vunpack.c.l.b16 %v141
    %v218 = vunpack.c.h.b16 %v141
    %v219 = vunpack.c.l.b16 %v142
    %v220 = vunpack.c.h.b16 %v142
    %v221 = vunpack.c.l.b16 %v143
    %v222 = vunpack.c.h.b16 %v143
    %v223 = vunpack.c.l.b16 %v144
    %v224 = vunpack.c.h.b16 %v144
    %v225 = vunpack.c.l.b16 %v145
    %v226 = vunpack.c.h.b16 %v145
    %v227 = vunpack.c.l.b16 %v146
    %v228 = vunpack.c.h.b16 %v146
    %v229 = vunpack.c.l.b16 %v147
    %v230 = vunpack.c.h.b16 %v147
    %v231 = vunpack.c.l.b16 %v148
    %v232 = vunpack.c.h.b16 %v148
    %v233 = vunpack.c.l.b16 %v149
    %v234 = vunpack.c.h.b16 %v149
    %v235 = vunpack.c.l.b16 %v150
    %v236 = vunpack.c.h.b16 %v150
    %v237 = vunpack.c.l.b16 %v151
    %v238 = vunpack.c.h.b16 %v151
    %v239 = vunpack.c.l.b16 %v152
    %v240 = vunpack.c.h.b16 %v152
    %v241 = vunpack.c.l.b16 %v153
    %v242 = vunpack.c.h.b16 %v153
    %v243 = vunpack.c.l.b16 %v154
    %v244 = vunpack.c.h.b16 %v154
    %v245 = vunpack.c.l.b16 %v155
    %v246 = vunpack.c.h.b16 %v155
    %v247 = vunpack.c.l.b16 %v156
    %v248 = vunpack.c.h.b16 %v156
    %v249 = vunpack.c.l.b16 %v157
    %v250 = vunpack.c.h.b16 %v157
    %v251 = vunpack.c.l.b16 %v158
    %v252 = vunpack.c.h.b16 %v158
    %v253 = vunpack.c.l.b16 %v159
    %v254 = vunpack.c.h.b16 %v159
    %v255 = vunpack.c.l.b16 %v160
    %v256 = vunpack.c.h.b16 %v160
    %v257 = vpack.c.b16 %v197, %v193
    %v258 = vpack.c.b16 %v198, %v194
    %v259 = vpack.c.b16 %v199, %v195
    %v260 = vpack.c.b16 %v200, %v196
    %v261 = vpack.c.b16 %v205, %v201
    %v262 = vpack.c.b16 %v206, %v202
    %v263 = vpack.c.b16 %v207, %v203
    %v264 = vpack.c.b16 %v208, %v204
    %v265 = vpack.c.b16 %v213, %v209
    %v266 = vpack.c.b16 %v214, %v210
    %v267 = vpack.c.b16 %v215, %v211
    %v268 = vpack.c.b16 %v216, %v212
    %v269 = vpack.c.b16 %v221, %v217
    %v270 = vpack.c.b16 %v222, %v218
    %v271 = vpack.c.b16 %v223, %v219
    %v272 = vpack.c.b16 %v224, %v220
    %v273 = vpack.c.b16 %v229, %v225
    %v274 = vpack.c.b16 %v230, %v226
    %v275 = vpack.c.b16 %v231, %v227
    %v276 = vpack.c.b16 %v232, %v228
    %v277 = vpack.c.b16 %v237, %v233
    %v278 = vpack.c.b16 %v238, %v234
    %v279 = vpack.c.b16 %v239, %v235
    %v280 = vpack.c.b16 %v240, %v236
    %v281 = vpack.c.b16 %v245, %v241
    %v282 = vpack.c.b16 %v246, %v242
    %v283 = vpack.c.b16 %v247, %v243
    %v284 = vpack.c.b16 %v248, %v244
    %v285 = vpack.c.b16 %v253, %v249
    %v286 = vpack.c.b16 %v254, %v250
    %v287 = vpack.c.b16 %v255, %v251
    %v288 = vpack.c.b16 %v256, %v252
    %321 = vmatpush.bf16.msra.mxu0 %v285
    %322 = vmatpush.bf16.msra.mxu0 %v281
    %323 = vmatpush.bf16.msra.mxu0 %v277
    %324 = vmatpush.bf16.msra.mxu0 %v273
    %325 = vmatpush.bf16.msra.mxu0 %v269
    %326 = vmatpush.bf16.msra.mxu0 %v265
    %327 = vmatpush.bf16.msra.mxu0 %v261
    %328 = vmatpush.bf16.msra.mxu0 %v257
    %329 = vmatmul.bf16.gmra.mxu0 %v128
    %v330 = vpop.f32.mrf.mxu0
    %v331 = vadd.f32 0.0, %v330
    %v332 = vpop.f32.mrf.mxu0
    %333 = vdwg.mxu0
    %334 = vmatpush.bf16.msra.mxu0 %v286
    %335 = vmatpush.bf16.msra.mxu0 %v282
    %336 = vmatpush.bf16.msra.mxu0 %v278
    %337 = vmatpush.bf16.msra.mxu0 %v274
    %338 = vmatpush.bf16.msra.mxu0 %v270
    %339 = vmatpush.bf16.msra.mxu0 %v266
    %340 = vmatpush.bf16.msra.mxu0 %v262
    %341 = vmatpush.bf16.msra.mxu0 %v258
    %342 = vmatmul.bf16.gmra.mxu0 %v128
    %v343 = vpop.f32.mrf.mxu0
    %v344 = vadd.f32 0.0, %v343
    %v345 = vpop.f32.mrf.mxu0
    %346 = vdwg.mxu0
    %347 = vmatpush.bf16.msra.mxu0 %v287
    %348 = vmatpush.bf16.msra.mxu0 %v283
    %349 = vmatpush.bf16.msra.mxu0 %v279
    %350 = vmatpush.bf16.msra.mxu0 %v275
    %351 = vmatpush.bf16.msra.mxu0 %v271
    %352 = vmatpush.bf16.msra.mxu0 %v267
    %353 = vmatpush.bf16.msra.mxu0 %v263
    %354 = vmatpush.bf16.msra.mxu0 %v259
    %355 = vmatmul.bf16.gmra.mxu0 %v128
    %v356 = vpop.f32.mrf.mxu0
    %v357 = vadd.f32 0.0, %v356
    %v358 = vpop.f32.mrf.mxu0
    %359 = vdwg.mxu0
    %360 = vmatpush.bf16.msra.mxu0 %v288
    %361 = vmatpush.bf16.msra.mxu0 %v284
    %362 = vmatpush.bf16.msra.mxu0 %v280
    %363 = vmatpush.bf16.msra.mxu0 %v276
    %364 = vmatpush.bf16.msra.mxu0 %v272
    %365 = vmatpush.bf16.msra.mxu0 %v268
    %366 = vmatpush.bf16.msra.mxu0 %v264
    %367 = vmatpush.bf16.msra.mxu0 %v260
    %368 = vmatmul.bf16.gmra.mxu0 %v128
    %v369 = vpop.f32.mrf.mxu0
    %v370 = vadd.f32 0.0, %v369
    %v371 = vpop.f32.mrf.mxu0
    %372 = vdwg.mxu0
    %v405 = vunpack.c.l.b16 %v96
    %v406 = vunpack.c.h.b16 %v96
    %v407 = vunpack.c.l.b16 %v97
    %v408 = vunpack.c.h.b16 %v97
    %v409 = vunpack.c.l.b16 %v98
    %v410 = vunpack.c.h.b16 %v98
    %v411 = vunpack.c.l.b16 %v99
    %v412 = vunpack.c.h.b16 %v99
    %v413 = vunpack.c.l.b16 %v100
    %v414 = vunpack.c.h.b16 %v100
    %v415 = vunpack.c.l.b16 %v101
    %v416 = vunpack.c.h.b16 %v101
    %v417 = vunpack.c.l.b16 %v102
    %v418 = vunpack.c.h.b16 %v102
    %v419 = vunpack.c.l.b16 %v103
    %v420 = vunpack.c.h.b16 %v103
    %v421 = vunpack.c.l.b16 %v104
    %v422 = vunpack.c.h.b16 %v104
    %v423 = vunpack.c.l.b16 %v105
    %v424 = vunpack.c.h.b16 %v105
    %v425 = vunpack.c.l.b16 %v106
    %v426 = vunpack.c.h.b16 %v106
    %v427 = vunpack.c.l.b16 %v107
    %v428 = vunpack.c.h.b16 %v107
    %v429 = vunpack.c.l.b16 %v108
    %v430 = vunpack.c.h.b16 %v108
    %v431 = vunpack.c.l.b16 %v109
    %v432 = vunpack.c.h.b16 %v109
    %v433 = vunpack.c.l.b16 %v110
    %v434 = vunpack.c.h.b16 %v110
    %v435 = vunpack.c.l.b16 %v111
    %v436 = vunpack.c.h.b16 %v111
    %v437 = vunpack.c.l.b16 %v112
    %v438 = vunpack.c.h.b16 %v112
    %v439 = vunpack.c.l.b16 %v113
    %v440 = vunpack.c.h.b16 %v113
    %v441 = vunpack.c.l.b16 %v114
    %v442 = vunpack.c.h.b16 %v114
    %v443 = vunpack.c.l.b16 %v115
    %v444 = vunpack.c.h.b16 %v115
    %v445 = vunpack.c.l.b16 %v116
    %v446 = vunpack.c.h.b16 %v116
    %v447 = vunpack.c.l.b16 %v117
    %v448 = vunpack.c.h.b16 %v117
    %v449 = vunpack.c.l.b16 %v118
    %v450 = vunpack.c.h.b16 %v118
    %v451 = vunpack.c.l.b16 %v119
    %v452 = vunpack.c.h.b16 %v119
    %v453 = vunpack.c.l.b16 %v120
    %v454 = vunpack.c.h.b16 %v120
    %v455 = vunpack.c.l.b16 %v121
    %v456 = vunpack.c.h.b16 %v121
    %v457 = vunpack.c.l.b16 %v122
    %v458 = vunpack.c.h.b16 %v122
    %v459 = vunpack.c.l.b16 %v123
    %v460 = vunpack.c.h.b16 %v123
    %v461 = vunpack.c.l.b16 %v124
    %v462 = vunpack.c.h.b16 %v124
    %v463 = vunpack.c.l.b16 %v125
    %v464 = vunpack.c.h.b16 %v125
    %v465 = vunpack.c.l.b16 %v126
    %v466 = vunpack.c.h.b16 %v126
    %v467 = vunpack.c.l.b16 %v127
    %v468 = vunpack.c.h.b16 %v127
    %v469 = vpack.c.b16 %v409, %v405
    %v470 = vpack.c.b16 %v410, %v406
    %v471 = vpack.c.b16 %v411, %v407
    %v472 = vpack.c.b16 %v412, %v408
    %v473 = vpack.c.b16 %v417, %v413
    %v474 = vpack.c.b16 %v418, %v414
    %v475 = vpack.c.b16 %v419, %v415
    %v476 = vpack.c.b16 %v420, %v416
    %v477 = vpack.c.b16 %v425, %v421
    %v478 = vpack.c.b16 %v426, %v422
    %v479 = vpack.c.b16 %v427, %v423
    %v480 = vpack.c.b16 %v428, %v424
    %v481 = vpack.c.b16 %v433, %v429
    %v482 = vpack.c.b16 %v434, %v430
    %v483 = vpack.c.b16 %v435, %v431
    %v484 = vpack.c.b16 %v436, %v432
    %v485 = vpack.c.b16 %v441, %v437
    %v486 = vpack.c.b16 %v442, %v438
    %v487 = vpack.c.b16 %v443, %v439
    %v488 = vpack.c.b16 %v444, %v440
    %v489 = vpack.c.b16 %v449, %v445
    %v490 = vpack.c.b16 %v450, %v446
    %v491 = vpack.c.b16 %v451, %v447
    %v492 = vpack.c.b16 %v452, %v448
    %v493 = vpack.c.b16 %v457, %v453
    %v494 = vpack.c.b16 %v458, %v454
    %v495 = vpack.c.b16 %v459, %v455
    %v496 = vpack.c.b16 %v460, %v456
    %v497 = vpack.c.b16 %v465, %v461
    %v498 = vpack.c.b16 %v466, %v462
    %v499 = vpack.c.b16 %v467, %v463
    %v500 = vpack.c.b16 %v468, %v464
    %533 = vmatpush.bf16.msra.mxu0 %v497
    %534 = vmatpush.bf16.msra.mxu0 %v493
    %535 = vmatpush.bf16.msra.mxu0 %v489
    %536 = vmatpush.bf16.msra.mxu0 %v485
    %537 = vmatpush.bf16.msra.mxu0 %v481
    %538 = vmatpush.bf16.msra.mxu0 %v477
    %539 = vmatpush.bf16.msra.mxu0 %v473
    %540 = vmatpush.bf16.msra.mxu0 %v469
    %541 = vmatmul.bf16.gmra.mxu0 %v95
    %v542 = vpop.f32.mrf.mxu0
    %v543 = vadd.f32 %v331, %v542
    %v544 = vpop.f32.mrf.mxu0
    %545 = vdwg.mxu0
    %546 = vmatpush.bf16.msra.mxu0 %v498
    %547 = vmatpush.bf16.msra.mxu0 %v494
    %548 = vmatpush.bf16.msra.mxu0 %v490
    %549 = vmatpush.bf16.msra.mxu0 %v486
    %550 = vmatpush.bf16.msra.mxu0 %v482
    %551 = vmatpush.bf16.msra.mxu0 %v478
    %552 = vmatpush.bf16.msra.mxu0 %v474
    %553 = vmatpush.bf16.msra.mxu0 %v470
    %554 = vmatmul.bf16.gmra.mxu0 %v95
    %v555 = vpop.f32.mrf.mxu0
    %v556 = vadd.f32 %v344, %v555
    %v557 = vpop.f32.mrf.mxu0
    %558 = vdwg.mxu0
    %559 = vmatpush.bf16.msra.mxu0 %v499
    %560 = vmatpush.bf16.msra.mxu0 %v495
    %561 = vmatpush.bf16.msra.mxu0 %v491
    %562 = vmatpush.bf16.msra.mxu0 %v487
    %563 = vmatpush.bf16.msra.mxu0 %v483
    %564 = vmatpush.bf16.msra.mxu0 %v479
    %565 = vmatpush.bf16.msra.mxu0 %v475
    %566 = vmatpush.bf16.msra.mxu0 %v471
    %567 = vmatmul.bf16.gmra.mxu0 %v95
    %v568 = vpop.f32.mrf.mxu0
    %v569 = vadd.f32 %v357, %v568
    %v570 = vpop.f32.mrf.mxu0
    %571 = vdwg.mxu0
    %572 = vmatpush.bf16.msra.mxu0 %v500
    %573 = vmatpush.bf16.msra.mxu0 %v496
    %574 = vmatpush.bf16.msra.mxu0 %v492
    %575 = vmatpush.bf16.msra.mxu0 %v488
    %576 = vmatpush.bf16.msra.mxu0 %v484
    %577 = vmatpush.bf16.msra.mxu0 %v480
    %578 = vmatpush.bf16.msra.mxu0 %v476
    %579 = vmatpush.bf16.msra.mxu0 %v472
    %580 = vmatmul.bf16.gmra.mxu0 %v95
    %v581 = vpop.f32.mrf.mxu0
    %v582 = vadd.f32 %v370, %v581
    %v583 = vpop.f32.mrf.mxu0
    %584 = vdwg.mxu0
    %v585 = vld [vmem:[%s6] sm:$0xf]
    %v587 = vperm.slane %v585, 0
    %v588 = vperm.slane %v585, 1
    %v589 = vperm.slane %v585, 2
    %v590 = vperm.slane %v585, 3
    %v595 = vadd.f32 %v543, %v587
    %v596 = vadd.f32 %v556, %v588
    %v597 = vadd.f32 %v569, %v589
    %v598 = vadd.f32 %v582, %v590
    %v599 = vxor.u32 %v595, 2147483648
    %v600 = vmul.f32 %v599, 1.442695
    %v601 = vpow.pop %v600
    %v602 = vadd.f32 %v601, 1.0
    %v603 = vrcp.pop %v602
    %v604 = vmul.f32 %v602, %v603
    %v605 = vsub.f32 1.0, %v604
    %v606 = vmul.f32 %v603, %v605
    %v607 = vadd.f32 %v603, %v606
    %vm608 = vweird.f32 %v602
    %vm609 = vweird.f32 %v603
    %vm610 = vmor %vm608, %vm609
    %v611 = vsel %vm610, %v603, %v607
    %v612 = vand.u32 2147483647, %v602
    %vm613 = vcmp.eq.f32.partialorder %v612, 8.507059e+37
    %v614 = vand.u32 %v602, 2147483648
    %v615 = vor.u32 1.1754944e-38, %v614
    %v616 = vsel %vm613, %v615, %v611
    %v617 = vmul.f32 1.0, %v616
    %v618 = vxor.u32 %v596, 2147483648
    %v619 = vmul.f32 %v618, 1.442695
    %v620 = vpow.pop %v619
    %v621 = vadd.f32 %v620, 1.0
    %v622 = vrcp.pop %v621
    %v623 = vmul.f32 %v621, %v622
    %v624 = vsub.f32 1.0, %v623
    %v625 = vmul.f32 %v622, %v624
    %v626 = vadd.f32 %v622, %v625
    %vm627 = vweird.f32 %v621
    %vm628 = vweird.f32 %v622
    %vm629 = vmor %vm627, %vm628
    %v630 = vsel %vm629, %v622, %v626
    %v631 = vand.u32 2147483647, %v621
    %vm632 = vcmp.eq.f32.partialorder %v631, 8.507059e+37
    %v633 = vand.u32 %v621, 2147483648
    %v634 = vor.u32 1.1754944e-38, %v633
    %v635 = vsel %vm632, %v634, %v630
    %v636 = vmul.f32 1.0, %v635
    %v637 = vtanh.pop %v597
    %v638 = vxor.u32 %v598, 2147483648
    %v639 = vmul.f32 %v638, 1.442695
    %v640 = vpow.pop %v639
    %v641 = vadd.f32 %v640, 1.0
    %v642 = vrcp.pop %v641
    %v643 = vmul.f32 %v641, %v642
    %v644 = vsub.f32 1.0, %v643
    %v645 = vmul.f32 %v642, %v644
    %v646 = vadd.f32 %v642, %v645
    %vm647 = vweird.f32 %v641
    %vm648 = vweird.f32 %v642
    %vm649 = vmor %vm647, %vm648
    %v650 = vsel %vm649, %v642, %v646
    %v651 = vand.u32 2147483647, %v641
    %vm652 = vcmp.eq.f32.partialorder %v651, 8.507059e+37
    %v653 = vand.u32 %v641, 2147483648
    %v654 = vor.u32 1.1754944e-38, %v653
    %v655 = vsel %vm652, %v654, %v650
    %v656 = vmul.f32 1.0, %v655
    %v657 = vmul.f32 %v636, %v94
    %v658 = vmul.f32 %v617, %v637
    %v659 = vadd.f32 %v657, %v658
    %v660 = vtanh.pop %v659
    %v661 = vmul.f32 %v656, %v660
    %662 = vst [vmem:[%s7] sm:$0xff] %v661
    %663 = vst [vmem:[%s7 + $0x8] sm:$0xff] %v659
    // Predicated region
    $region45: #{lstm_encoder_forward.1} parent=1 // pred_check
      _
    $region46: #{lstm_encoder_forward.1} parent=1 // pred_check_branch
      %665 = sbr.rel (0) target = $region48
    $region47: #{lstm_encoder_forward.1} parent=1 // pred_region
      _
    $region48: #{lstm_encoder_forward.1} parent=1 // pred_fallthru
      _
    // Predicated region
    $region49: #{lstm_encoder_forward.1} parent=1 // pred_check
      _
    $region50: #{lstm_encoder_forward.1} parent=1 // pred_check_branch
      %667 = sbr.rel (0) target = $region52
    $region51: #{lstm_encoder_forward.1} parent=1 // pred_region
      _
    $region52: #{lstm_encoder_forward.1} parent=1 // pred_fallthru
      _
    %668 = vsyncpa [#allocation6], 1
    %669 = vsyncpa [#allocation8], 1

</llo_original>
